<compile_context>
chip_gen: v7x
topology: tpu7x:2x2x1
jax: 0.10.0
libtpu: 0.0.40
codegen_flags: <defaults>
</compile_context>

<pallas_src>
from functools import partial

import jax
import jax.numpy as jnp
from jax.experimental import pallas as pl
from jax.experimental.pallas import tpu as pltpu


def _round_up(a, m):
    return ((a + m - 1) // m) * m


def _sublane(dtype):
    itm = jnp.dtype(dtype).itemsize
    return {4: 8, 2: 16, 1: 32}.get(itm, 8)


def _tile_bytes(shape, dtype):
    """VMEM bytes of a block after (sublane, lane) padding of the last two dims."""
    itm = jnp.dtype(dtype).itemsize
    lead = 1
    for d in shape[:-2]:
        lead *= int(d)
    return (lead * _round_up(int(shape[-2]), _sublane(dtype))
            * _round_up(int(shape[-1]), 128) * itm)


def _conv_bias_kernel(x_ref, xh_ref, w_ref, b_ref, o_ref, win_ref, *, K, TL):
    # x_ref:  (1, C_in, TL)      input tile, columns [l*TL, (l+1)*TL)  (native NCL)
    # xh_ref: (1, C_in, HALO)    halo columns [(l+1)*TL, (l+1)*TL + HALO)
    # w_ref:  (K, C_out, C_in)   conv weight, tap-major
    # b_ref:  (1, C_out, 1)      per-(batch, channel) bias (conv bias + context MLP), f32
    # o_ref:  (1, C_out, TL)     output tile (L on lanes -> lane-dense stores)
    # win_ref:(C_in, TL + HALO)  VMEM scratch: contiguous window for the K tap slices
    win_ref[:, :TL] = x_ref[0]
    win_ref[:, TL:] = xh_ref[0]
    # K accumulating MXU dots (no im2col buffer, no concat copies); f32 accumulation.
    acc = jnp.dot(w_ref[0], win_ref[:, :TL], preferred_element_type=jnp.float32)
    for t in range(1, K):
        acc = acc + jnp.dot(w_ref[t], win_ref[:, t:t + TL],
                            preferred_element_type=jnp.float32)
    o_ref[0] = (acc + b_ref[0]).astype(o_ref.dtype)


def contextual_conv1d_with_bias(x, conv_w, bias_bc, *, tile_l=1024,
                                compute_dtype=jnp.bfloat16, out_dtype=None):
    """Valid Conv1d (stride=1, dilation=1, groups=1) plus a per-(batch, channel) bias.

    x:       (B, C_in, L)       PyTorch NCL layout (consumed natively, no transposes)
    conv_w:  (C_out, C_in, K)   PyTorch Conv1d weight
    bias_bc: (B, C_out)         per-batch per-channel additive bias
    returns  (B, C_out, L_out), L_out = L - K + 1, dtype = out_dtype (default compute_dtype)
    """
    B, C_in, L = x.shape
    C_out, C_in_w, K = conv_w.shape
    assert C_in_w == C_in, "grouped conv not supported"
    L_out = L - K + 1
    assert L_out >= 1, "kernel_size larger than input length"
    out_dtype = compute_dtype if out_dtype is None else out_dtype

    HALO = 128                                   # lane-aligned halo block
    assert K - 1 <= HALO, "kernel_size too large for the fixed 128-column halo"

    # --- per-generation VMEM cap (v5e/v6e: 128 MiB physical -> ~96 MiB scoped;
    #     v7x: 64 MiB physical -> ~48 MiB scoped) ---
    try:
        info = pltpu.get_tpu_info()
        phys = int(getattr(info, "vmem_capacity_bytes", 64 << 20))
    except Exception:
        phys = 64 << 20
    vmem_cap = max(min(int(0.75 * phys), 100 << 20), 32 << 20)

    # --- tile length: multiple of HALO (=128), shrunk only if the real padded
    #     double-buffered working set would exceed the cap ---
    TL = max(HALO, min(_round_up(tile_l, HALO), _round_up(L_out, HALO)))

    def vmem_need(tl):
        blocks = (_tile_bytes((1, C_in, tl), compute_dtype)        # main x
                  + _tile_bytes((1, C_in, HALO), compute_dtype)    # halo
                  + _tile_bytes((K, C_out, C_in), compute_dtype)   # weight (constant index map)
                  + _tile_bytes((1, C_out, 1), jnp.float32)        # bias
                  + _tile_bytes((1, C_out, tl), out_dtype))        # output
        scratch = (_tile_bytes((C_in, tl + HALO), compute_dtype)   # window scratch
                   + 2 * _tile_bytes((C_out, tl), jnp.float32))    # f32 acc + shift temps
        return 2 * blocks + scratch + (4 << 20)                    # double-buffer + slack

    while TL > HALO and vmem_need(TL) > vmem_cap:
        TL -= HALO

    n_l = -(-L_out // TL)                        # cdiv
    L_out_pad = n_l * TL
    L_pad = L_out_pad + HALO
    halo_stride = TL // HALO
    vmem_limit = int(min(max(vmem_need(TL), 32 << 20), vmem_cap))

    # --- wrapper prep: one fused pad+cast pass over x; tiny weight/bias reshapes ---
    x_pad = jnp.pad(x, ((0, 0), (0, 0), (0, L_pad - L))).astype(compute_dtype)
    w = jnp.transpose(conv_w, (2, 0, 1)).astype(compute_dtype)      # (K, C_out, C_in)
    bias = bias_bc.astype(jnp.float32).reshape(B, C_out, 1)

    kernel = partial(_conv_bias_kernel, K=K, TL=TL)

    out = pl.pallas_call(
        kernel,
        out_shape=jax.ShapeDtypeStruct((B, C_out, L_out_pad), out_dtype),
        grid=(B, n_l),
        in_specs=[
            pl.BlockSpec((1, C_in, TL), lambda b, l: (b, 0, l)),
            pl.BlockSpec((1, C_in, HALO), lambda b, l: (b, 0, (l + 1) * halo_stride)),
            # TODO(synk): on v7x, mark this constant-index weight block
            # pipeline_mode=pl.Buffered(1) when K*C_in*C_out is very large to halve
            # its VMEM footprint (it is budgeted as double-buffered above).
            pl.BlockSpec((K, C_out, C_in), lambda b, l: (0, 0, 0)),
            pl.BlockSpec((1, C_out, 1), lambda b, l: (b, 0, 0)),
        ],
        out_specs=pl.BlockSpec((1, C_out, TL), lambda b, l: (b, 0, l)),
        scratch_shapes=[pltpu.VMEM((C_in, TL + HALO), compute_dtype)],
        compiler_params=pltpu.CompilerParams(
            dimension_semantics=("parallel", "parallel"),
            vmem_limit_bytes=vmem_limit),
    )(x_pad, x_pad, w, bias)

    if L_out_pad != L_out:
        # TODO(synk): emit L_out directly via a clipped final block to drop this
        # slice (it is usually fused into the consumer by XLA anyway).
        out = out[:, :, :L_out]
    return out


def contextual_conv1d(x, conv_w, conv_b, c, w1, b1, w2, b2, *, tile_l=1024,
                      compute_dtype=jnp.bfloat16, out_dtype=None):
    """ContextualConv1d forward: Conv1d(x) + per-channel bias from MLP(c).

    The context processor (Linear -> ReLU -> Linear) and the conv bias are hoisted
    out of the kernel into one well-shaped XLA matmul chain producing (B, C_out).
    """
    ctx = jnp.maximum(c.astype(jnp.float32) @ w1 + b1, 0.0) @ w2 + b2   # (B, C_out)
    bias_bc = ctx + conv_b[None, :].astype(jnp.float32)
    return contextual_conv1d_with_bias(x, conv_w, bias_bc, tile_l=tile_l,
                                       compute_dtype=compute_dtype,
                                       out_dtype=out_dtype)


def _reference(x, conv_w, conv_b, c, w1, b1, w2, b2):
    out = jax.lax.conv_general_dilated(
        x, conv_w, window_strides=(1,), padding="VALID",
        dimension_numbers=("NCH", "OIH", "NCH"))
    out = out + conv_b[None, :, None]
    ctx = jnp.maximum(c @ w1 + b1, 0.0) @ w2 + b2
    return out + ctx[:, :, None]


if __name__ == "__main__":
    # small deterministic shapes consistent with the module
    B, C_in, C_out, K, L = 2, 4, 8, 3, 16
    ctx_dim, h_dim = 6, 16

    key = jax.random.PRNGKey(0)
    ks = jax.random.split(key, 8)
    x = jax.random.normal(ks[0], (B, C_in, L), jnp.float32)
    c = jax.random.normal(ks[1], (B, ctx_dim), jnp.float32)

    # deterministic synthetic parameters (not a checkpoint load)
    conv_w = 0.1 * jax.random.normal(ks[2], (C_out, C_in, K), jnp.float32)
    conv_b = 0.1 * jax.random.normal(ks[3], (C_out,), jnp.float32)
    w1 = 0.1 * jax.random.normal(ks[4], (ctx_dim, h_dim), jnp.float32)
    b1 = 0.1 * jax.random.normal(ks[5], (h_dim,), jnp.float32)
    w2 = 0.1 * jax.random.normal(ks[6], (h_dim, C_out), jnp.float32)
    b2 = 0.1 * jax.random.normal(ks[7], (C_out,), jnp.float32)

    ref = _reference(x, conv_w, conv_b, c, w1, b1, w2, b2)

    # exact path (f32 operands / f32 output) — matches the module within f32 tol
    out_f32 = contextual_conv1d(x, conv_w, conv_b, c, w1, b1, w2, b2,
                                compute_dtype=jnp.float32, out_dtype=jnp.float32)
    out_f32 = jax.block_until_ready(out_f32)
    assert out_f32.shape == (B, C_out, L - K + 1), out_f32.shape
    assert jnp.allclose(out_f32, ref, atol=1e-4, rtol=1e-4), "f32 mismatch vs reference"

    # fast path (bf16 operands + bf16 writeback, f32 accumulation) — default
    out_bf16 = contextual_conv1d(x, conv_w, conv_b, c, w1, b1, w2, b2)
    out_bf16 = jax.block_until_ready(out_bf16)
    assert out_bf16.shape == (B, C_out, L - K + 1), out_bf16.shape
    assert out_bf16.dtype == jnp.bfloat16
    assert jnp.allclose(out_bf16.astype(jnp.float32), ref, atol=3e-2, rtol=3e-2), \
        "bf16 mismatch vs reference"

    print("KERNEL_OK")
</pallas_src>

<mosaic_0001>
module attributes {stable_mosaic.version = 11 : i64} {
  func.func @_conv_bias_kernel(%arg0: i32, %arg1: i32, %arg2: memref<1x4x128xf32, #tpu.memory_space<vmem>>, %arg3: memref<1x4x128xf32, #tpu.memory_space<vmem>>, %arg4: memref<3x8x4xf32, #tpu.memory_space<vmem>>, %arg5: memref<1x8x1xf32, #tpu.memory_space<vmem>>, %arg6: memref<1x8x128xf32, #tpu.memory_space<vmem>>, %arg7: memref<4x256xf32, #tpu.memory_space<vmem>>) attributes {dimension_semantics = [#tpu.dimension_semantics<parallel>, #tpu.dimension_semantics<parallel>], iteration_bounds = array<i64: 2, 1>, scalar_prefetch = 0 : i64, scratch_operands = 1 : i64, tpu.core_type = #tpu.core_type<tc>, window_params = [{transform_indices = @transform_0, window_bounds = array<i64: 1, 4, 128>}, {transform_indices = @transform_1, window_bounds = array<i64: 1, 4, 128>}, {pipeline_mode = #tpu.pipeline_mode<synchronous>, transform_indices = @transform_2, window_bounds = array<i64: 3, 8, 4>}, {transform_indices = @transform_3, window_bounds = array<i64: 1, 8, 1>}, {transform_indices = @transform_4, window_bounds = array<i64: 1, 8, 128>}]} {
    %c0 = arith.constant 0 : index
    %c0_0 = arith.constant 0 : index
    %c0_1 = arith.constant 0 : index
    %0 = vector.load %arg2[%c0, %c0_0, %c0_1] : memref<1x4x128xf32, #tpu.memory_space<vmem>>, vector<1x4x128xf32>
    %1 = vector.shape_cast %0 : vector<1x4x128xf32> to vector<4x128xf32>
    %c0_2 = arith.constant 0 : index
    %c0_3 = arith.constant 0 : index
    %2 = vector.load %arg7[%c0_2, %c0_3] : memref<4x256xf32, #tpu.memory_space<vmem>>, vector<4x128xf32>
    tpu.vector_store %arg7[%c0_2, %c0_3], %1 {strides = array<i32>} : memref<4x256xf32, #tpu.memory_space<vmem>>, vector<4x128xf32>,
    %c0_4 = arith.constant 0 : index
    %c0_5 = arith.constant 0 : index
    %c0_6 = arith.constant 0 : index
    %3 = vector.load %arg3[%c0_4, %c0_5, %c0_6] : memref<1x4x128xf32, #tpu.memory_space<vmem>>, vector<1x4x128xf32>
    %4 = vector.shape_cast %3 : vector<1x4x128xf32> to vector<4x128xf32>
    %c0_7 = arith.constant 0 : index
    %c128 = arith.constant 128 : index
    %5 = vector.load %arg7[%c0_7, %c128] : memref<4x256xf32, #tpu.memory_space<vmem>>, vector<4x128xf32>
    tpu.vector_store %arg7[%c0_7, %c128], %4 {strides = array<i32>} : memref<4x256xf32, #tpu.memory_space<vmem>>, vector<4x128xf32>,
    %c0_8 = arith.constant 0 : index
    %c0_9 = arith.constant 0 : index
    %c0_10 = arith.constant 0 : index
    %6 = vector.load %arg4[%c0_8, %c0_9, %c0_10] : memref<3x8x4xf32, #tpu.memory_space<vmem>>, vector<1x8x4xf32>
    %7 = vector.shape_cast %6 : vector<1x8x4xf32> to vector<8x4xf32>
    %c0_11 = arith.constant 0 : index
    %c0_12 = arith.constant 0 : index
    %8 = vector.load %arg7[%c0_11, %c0_12] : memref<4x256xf32, #tpu.memory_space<vmem>>, vector<4x128xf32>
    %cst = arith.constant dense<0.000000e+00> : vector<8x128xf32>
    %9 = tpu.matmul %7, %8, %cst {dimension_numbers = #tpu.dot_dimension_numbers<[1], [0], [0], [1], [0, 0, 1, 1], [], []>} : vector<8x4xf32>, vector<4x128xf32>, vector<8x128xf32> -> vector<8x128xf32>
    %c1 = arith.constant 1 : index
    %c0_13 = arith.constant 0 : index
    %c0_14 = arith.constant 0 : index
    %10 = vector.load %arg4[%c1, %c0_13, %c0_14] : memref<3x8x4xf32, #tpu.memory_space<vmem>>, vector<1x8x4xf32>
    %11 = vector.shape_cast %10 : vector<1x8x4xf32> to vector<8x4xf32>
    %c0_15 = arith.constant 0 : index
    %c1_16 = arith.constant 1 : index
    %12 = vector.load %arg7[%c0_15, %c1_16] : memref<4x256xf32, #tpu.memory_space<vmem>>, vector<4x128xf32>
    %cst_17 = arith.constant dense<0.000000e+00> : vector<8x128xf32>
    %13 = tpu.matmul %11, %12, %cst_17 {dimension_numbers = #tpu.dot_dimension_numbers<[1], [0], [0], [1], [0, 0, 1, 1], [], []>} : vector<8x4xf32>, vector<4x128xf32>, vector<8x128xf32> -> vector<8x128xf32>
    %14 = arith.addf %9, %13 : vector<8x128xf32>
    %c2 = arith.constant 2 : index
    %c0_18 = arith.constant 0 : index
    %c0_19 = arith.constant 0 : index
    %15 = vector.load %arg4[%c2, %c0_18, %c0_19] : memref<3x8x4xf32, #tpu.memory_space<vmem>>, vector<1x8x4xf32>
    %16 = vector.shape_cast %15 : vector<1x8x4xf32> to vector<8x4xf32>
    %c0_20 = arith.constant 0 : index
    %c2_21 = arith.constant 2 : index
    %17 = vector.load %arg7[%c0_20, %c2_21] : memref<4x256xf32, #tpu.memory_space<vmem>>, vector<4x128xf32>
    %cst_22 = arith.constant dense<0.000000e+00> : vector<8x128xf32>
    %18 = tpu.matmul %16, %17, %cst_22 {dimension_numbers = #tpu.dot_dimension_numbers<[1], [0], [0], [1], [0, 0, 1, 1], [], []>} : vector<8x4xf32>, vector<4x128xf32>, vector<8x128xf32> -> vector<8x128xf32>
    %19 = arith.addf %14, %18 : vector<8x128xf32>
    %c0_23 = arith.constant 0 : index
    %c0_24 = arith.constant 0 : index
    %c0_25 = arith.constant 0 : index
    %20 = vector.load %arg5[%c0_23, %c0_24, %c0_25] : memref<1x8x1xf32, #tpu.memory_space<vmem>>, vector<1x8x1xf32>
    %21 = vector.shape_cast %20 : vector<1x8x1xf32> to vector<8x1xf32>
    %22 = vector.broadcast %21 : vector<8x1xf32> to vector<8x128xf32>
    %23 = arith.addf %19, %22 : vector<8x128xf32>
    %c0_26 = arith.constant 0 : index
    %c0_27 = arith.constant 0 : index
    %c0_28 = arith.constant 0 : index
    %24 = vector.load %arg6[%c0_26, %c0_27, %c0_28] : memref<1x8x128xf32, #tpu.memory_space<vmem>>, vector<1x8x128xf32>
    %25 = vector.shape_cast %24 : vector<1x8x128xf32> to vector<8x128xf32>
    %26 = vector.shape_cast %23 : vector<8x128xf32> to vector<1x8x128xf32>
    tpu.vector_store %arg6[%c0_26, %c0_27, %c0_28], %26 {strides = array<i32>} : memref<1x8x128xf32, #tpu.memory_space<vmem>>, vector<1x8x128xf32>,
    return
  }
  func.func @transform_0(%arg0: i32, %arg1: i32) -> (i32, i32, i32) {
    %c0_i32 = arith.constant 0 : i32
    %c0_i32_0 = arith.constant 0 : i32
    return %arg0, %c0_i32, %arg1 : i32, i32, i32
  }
  func.func @transform_1(%arg0: i32, %arg1: i32) -> (i32, i32, i32) {
    %c1_i32 = arith.constant 1 : i32
    %0 = arith.addi %arg1, %c1_i32 : i32
    %c1_i32_0 = arith.constant 1 : i32
    %1 = arith.muli %0, %c1_i32_0 : i32
    %c0_i32 = arith.constant 0 : i32
    %c0_i32_1 = arith.constant 0 : i32
    return %arg0, %c0_i32, %1 : i32, i32, i32
  }
  func.func @transform_2(%arg0: i32, %arg1: i32) -> (i32, i32, i32) {
    %c0_i32 = arith.constant 0 : i32
    %c0_i32_0 = arith.constant 0 : i32
    %c0_i32_1 = arith.constant 0 : i32
    %c0_i32_2 = arith.constant 0 : i32
    return %c0_i32, %c0_i32_0, %c0_i32_1 : i32, i32, i32
  }
  func.func @transform_3(%arg0: i32, %arg1: i32) -> (i32, i32, i32) {
    %c0_i32 = arith.constant 0 : i32
    %c0_i32_0 = arith.constant 0 : i32
    %c0_i32_1 = arith.constant 0 : i32
    return %arg0, %c0_i32, %c0_i32_0 : i32, i32, i32
  }
  func.func @transform_4(%arg0: i32, %arg1: i32) -> (i32, i32, i32) {
    %c0_i32 = arith.constant 0 : i32
    %c0_i32_0 = arith.constant 0 : i32
    return %arg0, %c0_i32, %arg1 : i32, i32, i32
  }
}

</mosaic_0001>

<llo_original>
// kernel: tpu_custom_call.1
$region0: #{tpu_custom_call.1}
  #allocation0 [shape = 'u32[]', space=smem, size = 0x4, offset = 0x4, fixed_abs, tag = 'smem constant byte address 0x4 - core index']
  #allocation1 [shape = 'u32[144,128]{1,0:T(1,128)}', space=vmem, size = 0x12000, scoped, tag = 'internal scratch']
  #allocation2 [shape = 'f32[4,256]{1,0:T(4,128)}', space=vmem, size = 0x1000, scoped, tag = 'scratch operand']
  %s0 = inlined_call_operand.vmem [shape: f32[2,4,256], index: 0, kind: input, shape index: {}]
  %s1 = inlined_call_operand.vmem [shape: f32[2,4,256], index: 1, kind: input, shape index: {}]
  %s2 = inlined_call_operand.vmem [shape: f32[3,8,4], index: 2, kind: input, shape index: {}]
  %s3 = inlined_call_operand.vmem [shape: f32[2,8,1], index: 3, kind: input, shape index: {}]
  %s4 = inlined_call_operand.hbm [shape: f32[2,8,128], index: 4, kind: output, shape index: {}]
  %s5 = sld [smem:[#allocation0]]
  $region49: #{tpu_custom_call.1} parent=0
    _
  %s7 = ssub.s32 1, %s5
  %s8 = scalar_select 0, %s7, %s5
  $region1: #{tpu_custom_call.1} parent=0
    #allocation3 [shape = 'u8[8192]{0}', space=vmem, size = 0x2000, scoped, tag = 'output window, operand 0']
    #allocation4 [shape = 's32[2]{0}', space=sflag, size = 0x8, scoped, tag = 'scoped memory for tpu_custom_call.1']
    %9 = vsyncpa [#allocation4], 0
    %s10 = scalar_lea.sflag [#allocation4], 1
    %11 = vsyncpa %s10, 0
    loop: start=0, step=1, limit=4
    $region2: #{tpu_custom_call.1} parent=1 // loop_pre_header
      _
    $region3: #{tpu_custom_call.1} parent=1 // loop_header
      %s13 = sphi 0, %s17
      %p14 = scmp.ge.s32.totalorder %s13, 4
      %s20 = sphi 0, %s32
      %s21 = sphi 0, %s28
      %s22 = sphi 0, %s20
      %s23 = sphi 0, %s21
      %s24 = sphi 0, %s22
      %s25 = sphi 0, %s23
      %s37 = sphi 0, %s39
      %s40 = sphi 0, %s37
      %s41 = sphi 0, %s40
      %s57 = sphi 0, %s41
      %s67 = sphi 0, %s69
      %s70 = sphi 0, %s67
      %s71 = sphi 0, %s70
      %s87 = sphi 0, %s71
      %s91 = sphi 0, %s91
      %s93 = sphi 0, %s91
      %s94 = sphi 0, %s93
      %s108 = sphi 0, %s94
      %s114 = sphi 0, %s116
      %s117 = sphi 0, %s114
      %s118 = sphi 0, %s117
      %s134 = sphi 0, %s118
      %s142 = sphi 0, %s144
      %s145 = sphi 0, %s142
      %s146 = sphi 0, %s145
      %s162 = sphi 0, %s146
    $region4: #{tpu_custom_call.1} parent=1 // loop_header_branch
      %16 = sbr.rel (%p14) target = $region8
    $region5: #{tpu_custom_call.1} parent=1 // loop_body
      %s18 = ssub.s32 %s13, 1
      %s19 = ssub.s32 %s13, 2
      %s26 = sadd.s32 1, %s21
      %p27 = scmp.ge.s32.totalorder %s26, 1
      %s28 = scalar_select %p27, 0, %s26
      %s29 = sadd.s32 1, %s20
      %s30 = scalar_select %p27, %s29, %s20
      %p31 = scmp.ge.s32.totalorder %s30, 2
      %s32 = scalar_select %p31, 0, %s30
      %s33 = ssub.s32 %s20, %s32
      %s34 = ssub.s32 %s21, %s28
      %s35 = sor.u32 %s33, %s34
      %p36 = scmp.eq.s32.totalorder %s35, 0
      %s38 = sadd.s32 %s37, 1
      %s39 = scalar_select %p36, %s37, %s38
      %p42 = pneg %p36
      %p43 = scmp.eq.s32.totalorder %s13, 1
      %p44 = por %p42, %p43
      %p45 = scmp.ne.s32.totalorder %s37, %s40
      %p46 = scmp.eq.s32.totalorder %s13, 0
      %p47 = por %p45, %p46
      %p48 = scmp.ne.s32.totalorder %s37, %s40
      %p49 = scmp.eq.s32.totalorder %s18, 1
      %p50 = por %p48, %p49
      %p51 = scmp.ne.s32.totalorder %s40, %s41
      %p52 = scmp.eq.s32.totalorder %s18, 0
      %p53 = por %p51, %p52
      %p54 = scmp.ne.s32.totalorder %s40, %s41
      %p55 = scmp.eq.s32.totalorder %s19, 1
      %p56 = por %p54, %p55
      %p58 = scmp.ne.s32.totalorder %s41, %s57
      %p59 = scmp.eq.s32.totalorder %s19, 0
      %p60 = por %p58, %p59
      %s61 = sadd.s32 %s21, 1
      %s62 = sadd.s32 %s28, 1
      %s63 = ssub.s32 %s20, %s32
      %s64 = ssub.s32 %s61, %s62
      %s65 = sor.u32 %s63, %s64
      %p66 = scmp.eq.s32.totalorder %s65, 0
      %s68 = sadd.s32 %s67, 1
      %s69 = scalar_select %p66, %s67, %s68
      %p72 = pneg %p66
      %p73 = scmp.eq.s32.totalorder %s13, 1
      %p74 = por %p72, %p73
      %p75 = scmp.ne.s32.totalorder %s67, %s70
      %p76 = scmp.eq.s32.totalorder %s13, 0
      %p77 = por %p75, %p76
      %p78 = scmp.ne.s32.totalorder %s67, %s70
      %p79 = scmp.eq.s32.totalorder %s18, 1
      %p80 = por %p78, %p79
      %p81 = scmp.ne.s32.totalorder %s70, %s71
      %p82 = scmp.eq.s32.totalorder %s18, 0
      %p83 = por %p81, %p82
      %p84 = scmp.ne.s32.totalorder %s70, %s71
      %p85 = scmp.eq.s32.totalorder %s19, 1
      %p86 = por %p84, %p85
      %p88 = scmp.ne.s32.totalorder %s71, %s87
      %p89 = scmp.eq.s32.totalorder %s19, 0
      %p90 = por %p88, %p89
      %s92 = sadd.s32 %s91, 1
      %p95 = scmp.eq.s32.totalorder %s13, 1
      %p96 = scmp.ne.s32.totalorder %s91, %s93
      %p97 = scmp.eq.s32.totalorder %s13, 0
      %p98 = por %p96, %p97
      %p99 = scmp.ne.s32.totalorder %s91, %s93
      %p100 = scmp.eq.s32.totalorder %s18, 1
      %p101 = por %p99, %p100
      %p102 = scmp.ne.s32.totalorder %s93, %s94
      %p103 = scmp.eq.s32.totalorder %s18, 0
      %p104 = por %p102, %p103
      %p105 = scmp.ne.s32.totalorder %s93, %s94
      %p106 = scmp.eq.s32.totalorder %s19, 1
      %p107 = por %p105, %p106
      %p109 = scmp.ne.s32.totalorder %s94, %s108
      %p110 = scmp.eq.s32.totalorder %s19, 0
      %p111 = por %p109, %p110
      %s112 = ssub.s32 %s20, %s32
      %p113 = scmp.eq.s32.totalorder %s112, 0
      %s115 = sadd.s32 %s114, 1
      %s116 = scalar_select %p113, %s114, %s115
      %p119 = pneg %p113
      %p120 = scmp.eq.s32.totalorder %s13, 1
      %p121 = por %p119, %p120
      %p122 = scmp.ne.s32.totalorder %s114, %s117
      %p123 = scmp.eq.s32.totalorder %s13, 0
      %p124 = por %p122, %p123
      %p125 = scmp.ne.s32.totalorder %s114, %s117
      %p126 = scmp.eq.s32.totalorder %s18, 1
      %p127 = por %p125, %p126
      %p128 = scmp.ne.s32.totalorder %s117, %s118
      %p129 = scmp.eq.s32.totalorder %s18, 0
      %p130 = por %p128, %p129
      %p131 = scmp.ne.s32.totalorder %s117, %s118
      %p132 = scmp.eq.s32.totalorder %s19, 1
      %p133 = por %p131, %p132
      %p135 = scmp.ne.s32.totalorder %s118, %s134
      %p136 = scmp.eq.s32.totalorder %s19, 0
      %p137 = por %p135, %p136
      %s138 = ssub.s32 %s20, %s32
      %s139 = ssub.s32 %s21, %s28
      %s140 = sor.u32 %s138, %s139
      %p141 = scmp.eq.s32.totalorder %s140, 0
      %s143 = sadd.s32 %s142, 1
      %s144 = scalar_select %p141, %s142, %s143
      %p147 = pneg %p141
      %p148 = scmp.eq.s32.totalorder %s13, 1
      %p149 = por %p147, %p148
      %p150 = scmp.ne.s32.totalorder %s142, %s145
      %p151 = scmp.eq.s32.totalorder %s13, 0
      %p152 = por %p150, %p151
      %p153 = scmp.ne.s32.totalorder %s142, %s145
      %p154 = scmp.eq.s32.totalorder %s18, 1
      %p155 = por %p153, %p154
      %p156 = scmp.ne.s32.totalorder %s145, %s146
      %p157 = scmp.eq.s32.totalorder %s18, 0
      %p158 = por %p156, %p157
      %p159 = scmp.ne.s32.totalorder %s145, %s146
      %p160 = scmp.eq.s32.totalorder %s19, 1
      %p161 = por %p159, %p160
      %p163 = scmp.ne.s32.totalorder %s146, %s162
      %p164 = scmp.eq.s32.totalorder %s19, 0
      %p165 = por %p163, %p164
      %p166 = scmp.le.s32.totalorder 1, %s13
      %p167 = scmp.lt.s32.totalorder %s13, 3
      %p168 = pnand %p166, %p167
      %p169 = pneg %p168
      // Predicated region
      $region9: #{tpu_custom_call.1} parent=5 // pred_check
        _
      $region10: #{tpu_custom_call.1} parent=5 // pred_check_branch
        %171 = sbr.rel (%p168) target = $region12
      $region11: #{tpu_custom_call.1} parent=5 // pred_region
        %s172 = ssub.s32 %s13, 1
        // Predicated region
        $region13: #{tpu_custom_call.1} parent=11 // pred_check
          %p173 = pneg %p104
        $region14: #{tpu_custom_call.1} parent=11 // pred_check_branch
          %175 = sbr.rel (%p173) target = $region16
        $region15: #{tpu_custom_call.1} parent=11 // pred_region
          _
        $region16: #{tpu_custom_call.1} parent=11 // pred_fallthru
          _
      $region12: #{tpu_custom_call.1} parent=5 // pred_fallthru
        _
      %p176 = scmp.lt.s32.totalorder %s13, 2
      // Predicated region
      $region17: #{tpu_custom_call.1} parent=5 // pred_check
        %p177 = pneg %p176
      $region18: #{tpu_custom_call.1} parent=5 // pred_check_branch
        %179 = sbr.rel (%p177) target = $region20
      $region19: #{tpu_custom_call.1} parent=5 // pred_region
        // Predicated region
        $region21: #{tpu_custom_call.1} parent=19 // pred_check
          %p180 = pneg %p47
        $region22: #{tpu_custom_call.1} parent=19 // pred_check_branch
          %182 = sbr.rel (%p180) target = $region24
        $region23: #{tpu_custom_call.1} parent=19 // pred_region
          %p183 = scmp.lt.s32.totalorder %s20, 1
          %s184 = scalar_select %p183, %s20, 1
          %p185 = scmp.lt.s32.totalorder %s21, 1
          %s186 = scalar_select %p185, %s21, 1
          %s187 = smul.addr %s184, 2
          %s188 = sadd.s32 %s186, %s187
          %s189 = smul.addr %s188, 4
          %s190 = scalar_lea.vmem %s0, %s189
        $region24: #{tpu_custom_call.1} parent=19 // pred_fallthru
          _
        // Predicated region
        $region25: #{tpu_custom_call.1} parent=19 // pred_check
          %p191 = pneg %p77
        $region26: #{tpu_custom_call.1} parent=19 // pred_check_branch
          %193 = sbr.rel (%p191) target = $region28
        $region27: #{tpu_custom_call.1} parent=19 // pred_region
          %s194 = sadd.s32 %s21, 1
          %p195 = scmp.lt.s32.totalorder %s20, 1
          %s196 = scalar_select %p195, %s20, 1
          %p197 = scmp.lt.s32.totalorder %s194, 1
          %s198 = scalar_select %p197, %s194, 1
          %s199 = smul.addr %s196, 2
          %s200 = sadd.s32 %s198, %s199
          %s201 = smul.addr %s200, 4
          %s202 = scalar_lea.vmem %s1, %s201
          %s203 = sadd.s32 %s21, 1
        $region28: #{tpu_custom_call.1} parent=19 // pred_fallthru
          _
        // Predicated region
        $region29: #{tpu_custom_call.1} parent=19 // pred_check
          %p204 = pneg %p124
        $region30: #{tpu_custom_call.1} parent=19 // pred_check_branch
          %206 = sbr.rel (%p204) target = $region32
        $region31: #{tpu_custom_call.1} parent=19 // pred_region
          %p207 = scmp.lt.s32.totalorder %s20, 1
          %s208 = scalar_select %p207, %s20, 1
          %s209 = smul.addr %s208, 8
          %s210 = scalar_lea.vmem %s3, %s209
        $region32: #{tpu_custom_call.1} parent=19 // pred_fallthru
          _
      $region20: #{tpu_custom_call.1} parent=5 // pred_fallthru
        _
      %p211 = scmp.le.s32.totalorder 1, %s13
      %p212 = scmp.lt.s32.totalorder %s13, 3
      %p213 = pnand %p211, %p212
      %p214 = pneg %p213
      // Predicated region
      $region33: #{tpu_custom_call.1} parent=5 // pred_check
        _
      $region34: #{tpu_custom_call.1} parent=5 // pred_check_branch
        %216 = sbr.rel (%p213) target = $region36
      $region35: #{tpu_custom_call.1} parent=5 // pred_region
        %s217 = ssub.s32 %s13, 1
        %p218 = scmp.lt.s32.totalorder %s22, 1
        %s219 = scalar_select %p218, %s22, 1
        %p220 = scmp.lt.s32.totalorder %s23, 1
        %s221 = scalar_select %p220, %s23, 1
        %s222 = smul.addr %s219, 2
        %s223 = sadd.s32 %s221, %s222
        %s224 = smul.addr %s223, 4
        %s225 = scalar_lea.vmem %s0, %s224
        %p226 = pneg %p53
        %p227 = pneg %p50
        %s228 = sadd.s32 %s23, 1
        %p229 = scmp.lt.s32.totalorder %s22, 1
        %s230 = scalar_select %p229, %s22, 1
        %p231 = scmp.lt.s32.totalorder %s228, 1
        %s232 = scalar_select %p231, %s228, 1
        %s233 = smul.addr %s230, 2
        %s234 = sadd.s32 %s232, %s233
        %s235 = smul.addr %s234, 4
        %s236 = scalar_lea.vmem %s1, %s235
        %p237 = pneg %p83
        %p238 = pneg %p80
        %p239 = pneg %p104
        %p240 = pneg %p101
        %p241 = scmp.lt.s32.totalorder %s22, 1
        %s242 = scalar_select %p241, %s22, 1
        %s243 = smul.addr %s242, 8
        %s244 = scalar_lea.vmem %s3, %s243
        %p245 = pneg %p130
        %p246 = pneg %p127
        %p247 = pneg %p158
        %p248 = pneg %p155
        %s249 = sand.u32 %s145, 1
        %s250 = scalar_lea.sflag [#allocation4], %s249
        %s251 = sand.u32 %s145, 1
        %s252 = smul.addr %s251, 8
        %s253 = scalar_lea.vmem [#allocation3], %s252
        %p254 = scmp.lt.s32.totalorder %s22, 1
        %s255 = scalar_select %p254, %s22, 1
        %p256 = scmp.lt.s32.totalorder %s23, 1
        %s257 = scalar_select %p256, %s23, 1
        %s258 = smul.addr %s255, 2
        %s259 = sadd.s32 %s257, %s258
        %s260 = smul.addr %s259, 4
        %s261 = scalar_lea.vmem %s0, %s260
        %s262 = sadd.s32 %s23, 1
        %p263 = scmp.lt.s32.totalorder %s22, 1
        %s264 = scalar_select %p263, %s22, 1
        %p265 = scmp.lt.s32.totalorder %s262, 1
        %s266 = scalar_select %p265, %s262, 1
        %s267 = smul.addr %s264, 2
        %s268 = sadd.s32 %s266, %s267
        %s269 = smul.addr %s268, 4
        %s270 = scalar_lea.vmem %s1, %s269
        %s271 = sadd.s32 %s23, 1
        %p272 = scmp.lt.s32.totalorder %s22, 1
        %s273 = scalar_select %p272, %s22, 1
        %s274 = smul.addr %s273, 8
        %s275 = scalar_lea.vmem %s3, %s274
        %v276 = vld [vmem:[%s261] sm:$0xf]
        %277 = vst [vmem:[#allocation2] sm:$0xf] %v276
        %v278 = vld [vmem:[%s270] sm:$0xf]
        %279 = vst [vmem:[#allocation2 + $0x4] sm:$0xf] %v278
        %v280 = vld [vmem:[%s2] sm:$0xff]
        %v281 = vld [vmem:[#allocation2] sm:$0xf]
        %s282 = scalar_lea.vmem %s2, 8
        %v283 = vld [vmem:[%s282] sm:$0xff]
        %v284 = vld [vmem:[#allocation2] sm:$0xff]
        %v286 = vcombine.high %v284, %v284
        %287 = vrot.lane.b32.xlu0 %v284, 127
        %v288 = vpop.permute.xlu0 %287
        %289 = vrot.lane.b32.xlu0 %v286, 127
        %v290 = vpop.permute.xlu0 %289
        %vm291 = vcmask 1039360
        %v292 = vsel %vm291, %v288, %v290
        %vm293 = vcmask 31744
        %v295 = vsel %vm293, %v283, 0
        %vm297 = vcmask 1043456
        %v298 = vsel %vm297, %v292, 0
        %300 = vmatprep.subr.mxu0 0.0
        %301 = vmatpush1.msra.mxu0 %v298
        %302 = vmatprep.subr.mxu0 0.0
        %303 = vmatpush1.msra.mxu0 0.0
        %304 = vmatprep.subr.mxu0 0.0
        %305 = vmatpush1.msra.mxu0 0.0
        %306 = vmatprep.subr.mxu0 0.0
        %307 = vmatpush1.msra.mxu0 0.0
        %308 = vmatprep.subr.mxu0 0.0
        %309 = vmatpush1.msra.mxu0 0.0
        %310 = vmatprep.subr.mxu0 0.0
        %311 = vmatpush1.msra.mxu0 0.0
        %312 = vmatprep.subr.mxu0 0.0
        %313 = vmatpush1.msra.mxu0 0.0
        %314 = vmatprep.subr.mxu0 0.0
        %315 = vmatpush1.msra.mxu0 0.0
        %316 = vmatprep.subr.mxu0 0.0
        %317 = vmatpush1.msra.mxu0 0.0
        %318 = vmatprep.subr.mxu0 0.0
        %319 = vmatpush1.msra.mxu0 0.0
        %320 = vmatprep.subr.mxu0 0.0
        %321 = vmatpush1.msra.mxu0 0.0
        %322 = vmatprep.subr.mxu0 0.0
        %323 = vmatpush1.msra.mxu0 0.0
        %324 = vmatprep.subr.mxu0 0.0
        %325 = vmatpush1.msra.mxu0 0.0
        %326 = vmatprep.subr.mxu0 0.0
        %327 = vmatpush1.msra.mxu0 0.0
        %328 = vmatprep.subr.mxu0 0.0
        %329 = vmatpush1.msra.mxu0 0.0
        %330 = vmatprep.subr.mxu0 0.0
        %331 = vmatpush1.msra.mxu0 0.0
        %332 = vmatprep.subr.mxu0 0.0
        %333 = vmatpush1.msra.mxu0 0.0
        %334 = vmatprep.subr.mxu0 0.0
        %335 = vmatpush1.msra.mxu0 0.0
        %336 = vmatprep.subr.mxu0 0.0
        %337 = vmatpush1.msra.mxu0 0.0
        %338 = vmatprep.subr.mxu0 0.0
        %339 = vmatpush1.msra.mxu0 0.0
        %340 = vmatprep.subr.mxu0 0.0
        %341 = vmatpush1.msra.mxu0 0.0
        %342 = vmatprep.subr.mxu0 0.0
        %343 = vmatpush1.msra.mxu0 0.0
        %344 = vmatprep.subr.mxu0 0.0
        %345 = vmatpush1.msra.mxu0 0.0
        %346 = vmatprep.subr.mxu0 0.0
        %347 = vmatpush1.msra.mxu0 0.0
        %348 = vmatprep.subr.mxu0 0.0
        %349 = vmatpush1.msra.mxu0 0.0
        %350 = vmatprep.subr.mxu0 0.0
        %351 = vmatpush1.msra.mxu0 0.0
        %352 = vmatprep.subr.mxu0 0.0
        %353 = vmatpush1.msra.mxu0 0.0
        %354 = vmatprep.subr.mxu0 0.0
        %355 = vmatpush1.msra.mxu0 0.0
        %356 = vmatprep.subr.mxu0 0.0
        %357 = vmatpush1.msra.mxu0 0.0
        %358 = vmatprep.subr.mxu0 0.0
        %359 = vmatpush1.msra.mxu0 0.0
        %360 = vmatprep.subr.mxu0 0.0
        %361 = vmatpush1.msra.mxu0 0.0
        %362 = vmatprep.subr.mxu0 0.0
        %363 = vmatpush1.msra.mxu0 0.0
        %364 = vmatprep.mubr.f32.mxu0 0.0
        %365 = vmatmul.mubr.f32.gmra.mrb[0].mxu0 %v295
        %v366 = vpop.f32.mrb[0].mxu0
        %v367 = vadd.f32 0.0, %v366
        %v368 = vpop.f32.mrb[0].mxu0
        %369 = vdwg.mxu0
        %v371 = vsel %vm293, %v280, 0
        %v374 = vsel %vm297, %v281, 0
        %376 = vmatprep.subr.mxu0 0.0
        %377 = vmatpush1.msra.mxu0 %v374
        %378 = vmatprep.subr.mxu0 0.0
        %379 = vmatpush1.msra.mxu0 0.0
        %380 = vmatprep.subr.mxu0 0.0
        %381 = vmatpush1.msra.mxu0 0.0
        %382 = vmatprep.subr.mxu0 0.0
        %383 = vmatpush1.msra.mxu0 0.0
        %384 = vmatprep.subr.mxu0 0.0
        %385 = vmatpush1.msra.mxu0 0.0
        %386 = vmatprep.subr.mxu0 0.0
        %387 = vmatpush1.msra.mxu0 0.0
        %388 = vmatprep.subr.mxu0 0.0
        %389 = vmatpush1.msra.mxu0 0.0
        %390 = vmatprep.subr.mxu0 0.0
        %391 = vmatpush1.msra.mxu0 0.0
        %392 = vmatprep.subr.mxu0 0.0
        %393 = vmatpush1.msra.mxu0 0.0
        %394 = vmatprep.subr.mxu0 0.0
        %395 = vmatpush1.msra.mxu0 0.0
        %396 = vmatprep.subr.mxu0 0.0
        %397 = vmatpush1.msra.mxu0 0.0
        %398 = vmatprep.subr.mxu0 0.0
        %399 = vmatpush1.msra.mxu0 0.0
        %400 = vmatprep.subr.mxu0 0.0
        %401 = vmatpush1.msra.mxu0 0.0
        %402 = vmatprep.subr.mxu0 0.0
        %403 = vmatpush1.msra.mxu0 0.0
        %404 = vmatprep.subr.mxu0 0.0
        %405 = vmatpush1.msra.mxu0 0.0
        %406 = vmatprep.subr.mxu0 0.0
        %407 = vmatpush1.msra.mxu0 0.0
        %408 = vmatprep.subr.mxu0 0.0
        %409 = vmatpush1.msra.mxu0 0.0
        %410 = vmatprep.subr.mxu0 0.0
        %411 = vmatpush1.msra.mxu0 0.0
        %412 = vmatprep.subr.mxu0 0.0
        %413 = vmatpush1.msra.mxu0 0.0
        %414 = vmatprep.subr.mxu0 0.0
        %415 = vmatpush1.msra.mxu0 0.0
        %416 = vmatprep.subr.mxu0 0.0
        %417 = vmatpush1.msra.mxu0 0.0
        %418 = vmatprep.subr.mxu0 0.0
        %419 = vmatpush1.msra.mxu0 0.0
        %420 = vmatprep.subr.mxu0 0.0
        %421 = vmatpush1.msra.mxu0 0.0
        %422 = vmatprep.subr.mxu0 0.0
        %423 = vmatpush1.msra.mxu0 0.0
        %424 = vmatprep.subr.mxu0 0.0
        %425 = vmatpush1.msra.mxu0 0.0
        %426 = vmatprep.subr.mxu0 0.0
        %427 = vmatpush1.msra.mxu0 0.0
        %428 = vmatprep.subr.mxu0 0.0
        %429 = vmatpush1.msra.mxu0 0.0
        %430 = vmatprep.subr.mxu0 0.0
        %431 = vmatpush1.msra.mxu0 0.0
        %432 = vmatprep.subr.mxu0 0.0
        %433 = vmatpush1.msra.mxu0 0.0
        %434 = vmatprep.subr.mxu0 0.0
        %435 = vmatpush1.msra.mxu0 0.0
        %436 = vmatprep.subr.mxu0 0.0
        %437 = vmatpush1.msra.mxu0 0.0
        %438 = vmatprep.subr.mxu0 0.0
        %439 = vmatpush1.msra.mxu0 0.0
        %440 = vmatprep.mubr.f32.mxu0 0.0
        %441 = vmatmul.mubr.f32.gmra.mrb[0].mxu0 %v371
        %v442 = vpop.f32.mrb[0].mxu0
        %v443 = vadd.f32 %v367, %v442
        %v444 = vpop.f32.mrb[0].mxu0
        %445 = vdwg.mxu0
        %s446 = scalar_lea.vmem %s2, 16
        %v447 = vld [vmem:[%s446] sm:$0xff]
        %v448 = vld [vmem:[#allocation2] sm:$0xff]
        %v450 = vcombine.high %v448, %v448
        %451 = vrot.lane.b32.xlu0 %v448, 126
        %v452 = vpop.permute.xlu0 %451
        %453 = vrot.lane.b32.xlu0 %v450, 126
        %v454 = vpop.permute.xlu0 %453
        %vm455 = vcmask 1031168
        %v456 = vsel %vm455, %v452, %v454
        %v458 = vsel %vm293, %v447, 0
        %v460 = vsel %vm297, %v456, 0
        %462 = vmatprep.subr.mxu0 0.0
        %463 = vmatpush1.msra.mxu0 %v460
        %464 = vmatprep.subr.mxu0 0.0
        %465 = vmatpush1.msra.mxu0 0.0
        %466 = vmatprep.subr.mxu0 0.0
        %467 = vmatpush1.msra.mxu0 0.0
        %468 = vmatprep.subr.mxu0 0.0
        %469 = vmatpush1.msra.mxu0 0.0
        %470 = vmatprep.subr.mxu0 0.0
        %471 = vmatpush1.msra.mxu0 0.0
        %472 = vmatprep.subr.mxu0 0.0
        %473 = vmatpush1.msra.mxu0 0.0
        %474 = vmatprep.subr.mxu0 0.0
        %475 = vmatpush1.msra.mxu0 0.0
        %476 = vmatprep.subr.mxu0 0.0
        %477 = vmatpush1.msra.mxu0 0.0
        %478 = vmatprep.subr.mxu0 0.0
        %479 = vmatpush1.msra.mxu0 0.0
        %480 = vmatprep.subr.mxu0 0.0
        %481 = vmatpush1.msra.mxu0 0.0
        %482 = vmatprep.subr.mxu0 0.0
        %483 = vmatpush1.msra.mxu0 0.0
        %484 = vmatprep.subr.mxu0 0.0
        %485 = vmatpush1.msra.mxu0 0.0
        %486 = vmatprep.subr.mxu0 0.0
        %487 = vmatpush1.msra.mxu0 0.0
        %488 = vmatprep.subr.mxu0 0.0
        %489 = vmatpush1.msra.mxu0 0.0
        %490 = vmatprep.subr.mxu0 0.0
        %491 = vmatpush1.msra.mxu0 0.0
        %492 = vmatprep.subr.mxu0 0.0
        %493 = vmatpush1.msra.mxu0 0.0
        %494 = vmatprep.subr.mxu0 0.0
        %495 = vmatpush1.msra.mxu0 0.0
        %496 = vmatprep.subr.mxu0 0.0
        %497 = vmatpush1.msra.mxu0 0.0
        %498 = vmatprep.subr.mxu0 0.0
        %499 = vmatpush1.msra.mxu0 0.0
        %500 = vmatprep.subr.mxu0 0.0
        %501 = vmatpush1.msra.mxu0 0.0
        %502 = vmatprep.subr.mxu0 0.0
        %503 = vmatpush1.msra.mxu0 0.0
        %504 = vmatprep.subr.mxu0 0.0
        %505 = vmatpush1.msra.mxu0 0.0
        %506 = vmatprep.subr.mxu0 0.0
        %507 = vmatpush1.msra.mxu0 0.0
        %508 = vmatprep.subr.mxu0 0.0
        %509 = vmatpush1.msra.mxu0 0.0
        %510 = vmatprep.subr.mxu0 0.0
        %511 = vmatpush1.msra.mxu0 0.0
        %512 = vmatprep.subr.mxu0 0.0
        %513 = vmatpush1.msra.mxu0 0.0
        %514 = vmatprep.subr.mxu0 0.0
        %515 = vmatpush1.msra.mxu0 0.0
        %516 = vmatprep.subr.mxu0 0.0
        %517 = vmatpush1.msra.mxu0 0.0
        %518 = vmatprep.subr.mxu0 0.0
        %519 = vmatpush1.msra.mxu0 0.0
        %520 = vmatprep.subr.mxu0 0.0
        %521 = vmatpush1.msra.mxu0 0.0
        %522 = vmatprep.subr.mxu0 0.0
        %523 = vmatpush1.msra.mxu0 0.0
        %524 = vmatprep.subr.mxu0 0.0
        %525 = vmatpush1.msra.mxu0 0.0
        %526 = vmatprep.mubr.f32.mxu0 0.0
        %527 = vmatmul.mubr.f32.gmra.mrb[0].mxu0 %v458
        %v528 = vpop.f32.mrb[0].mxu0
        %v529 = vadd.f32 0.0, %v528
        %v530 = vpop.f32.mrb[0].mxu0
        %531 = vdwg.mxu0
        %v532 = vadd.f32 %v443, %v529
        %v533 = vld [vmem:[%s275] sm:$0xff]
        %535 = vset.pattern.permute.xlu0 0
        %536 = vperm.xlu0 %535, %v533
        %v537 = vpop.permute.xlu0 %536
        %v539 = vadd.f32 %v532, %v537
        %540 = vst [vmem:[%s253] sm:$0xff] %v539
        %s541 = sand.u32 %s145, 1
        %s542 = scalar_lea.sflag [#allocation4], %s541
        %s543 = sand.u32 %s145, 1
        %s544 = smul.addr %s543, 8
        %s545 = scalar_lea.vmem [#allocation3], %s544
        // Predicated region
        $region37: #{tpu_custom_call.1} parent=35 // pred_check
          %p546 = pneg %p155
        $region38: #{tpu_custom_call.1} parent=35 // pred_check_branch
          %548 = sbr.rel (%p546) target = $region40
        $region39: #{tpu_custom_call.1} parent=35 // pred_region
          %s550 = ssub.s32 128, 128
          %551 = vsyncadd %s542, %s550
          %s552 = sadd.s32 %s23, %s22
          %s553 = smul.addr %s552, 128
          %s554 = scalar_lea.hbm %s4, %s553
          %s556 = sshll.u32 %s545, 4
          %s557 = int_to_ptr.vmem [resolvable:$true] %s556
          %559 = dma.vmem_to_hbm [thread:$0]  %s557, 128, %s554, %s542
        $region40: #{tpu_custom_call.1} parent=35 // pred_fallthru
          _
      $region36: #{tpu_custom_call.1} parent=5 // pred_fallthru
        _
      %p560 = scmp.le.s32.totalorder 2, %s13
      // Predicated region
      $region41: #{tpu_custom_call.1} parent=5 // pred_check
        %p561 = pneg %p560
      $region42: #{tpu_custom_call.1} parent=5 // pred_check_branch
        %563 = sbr.rel (%p561) target = $region44
      $region43: #{tpu_custom_call.1} parent=5 // pred_region
        %s564 = ssub.s32 %s13, 2
        // Predicated region
        $region45: #{tpu_custom_call.1} parent=43 // pred_check
          %p565 = pneg %p161
        $region46: #{tpu_custom_call.1} parent=43 // pred_check_branch
          %567 = sbr.rel (%p565) target = $region48
        $region47: #{tpu_custom_call.1} parent=43 // pred_region
          %s568 = sand.u32 %s146, 1
          %s569 = scalar_lea.sflag [#allocation4], %s568
          %s570 = sand.u32 %s146, 1
          %s571 = smul.addr %s570, 8
          %s572 = scalar_lea.vmem [#allocation3], %s571
          %573 = dma.done %s569, 128
        $region48: #{tpu_custom_call.1} parent=43 // pred_fallthru
          _
      $region44: #{tpu_custom_call.1} parent=5 // pred_fallthru
        _
    $region6: #{tpu_custom_call.1} parent=1 // loop_footer
      %s17 = sadd.s32 1, %s13
    $region7: #{tpu_custom_call.1} parent=1 // loop_footer_branch
      %12 = sbr.rel target = $region3
    $region8: #{tpu_custom_call.1} parent=1 // loop_exit
      _
    %574 = vsyncpa [#allocation4], 1
    %s575 = scalar_lea.sflag [#allocation4], 1
    %576 = vsyncpa %s575, 1

</llo_original>
